<compile_context>
chip_gen: v7x
topology: tpu7x:2x2x1
jax: 0.10.0
libtpu: 0.0.40
codegen_flags: <defaults>
</compile_context>

<pallas_src>
from typing import NamedTuple

import jax
import jax.numpy as jnp
from jax.experimental import pallas as pl
from jax.experimental.pallas import tpu as pltpu

_LANE = 128


def _round_up(x, m):
    return ((x + m - 1) // m) * m


def actor_fwd_kernel(s_ref,
                     w1_ref, b1_ref,
                     w2_ref, b2_ref,
                     wh_ref, bh_ref,
                     lo_ref, hi_ref,
                     out_ref):
    # fc1 + relu6  (MXU accumulate in f32, relu6 clip on the VPU in f32)
    h = jnp.dot(s_ref[...], w1_ref[...],
                preferred_element_type=jnp.float32) + b1_ref[...]
    h = jnp.clip(h, 0.0, 6.0)
    # fc2 + relu6
    h = jnp.dot(h.astype(w2_ref.dtype), w2_ref[...],
                preferred_element_type=jnp.float32) + b2_ref[...]
    h = jnp.clip(h, 0.0, 6.0)
    # fused heads: one lane-dense matmul producing [mu | log_std | zero pad]
    y = jnp.dot(h.astype(wh_ref.dtype), wh_ref[...],
                preferred_element_type=jnp.float32) + bh_ref[...]
    # per-column clamp rows: +-FLT_MAX on mu/pad columns (no-op),
    # [min_log_std, max_log_std] on the log_std columns.
    y = jnp.minimum(jnp.maximum(y, lo_ref[...]), hi_ref[...])
    out_ref[...] = y.astype(out_ref.dtype)


class PreparedActorParams(NamedTuple):
    w1: jax.Array       # (sp, hp)   compute_dtype
    b1: jax.Array       # (1, hp)    f32
    w2: jax.Array       # (hp, hp)   compute_dtype
    b2: jax.Array       # (1, hp)    f32
    w_head: jax.Array   # (hp, np_)  compute_dtype  [mu | log_std | 0-pad]
    b_head: jax.Array   # (1, np_)   f32
    lo: jax.Array       # (1, np_)   f32 clamp lower row
    hi: jax.Array       # (1, np_)   f32 clamp upper row
    state_dim: int
    sp: int             # padded state_dim (sublane multiple)
    hp: int             # padded hidden width (lane multiple)
    action_dim: int
    np_: int            # padded fused-head width (lane multiple)
    sublane: int        # 16 for bf16 operands, 8 for f32


def prepare_params(params, *, min_log_std, max_log_std,
                   compute_dtype=jnp.bfloat16):
    """One-time padding / head fusion / casting of the Actor weights.

    Call once after (re)initializing or updating the parameters; the per-step
    forward path then only touches the activation tensor.
    """
    state_dim, hidden_dim = params["w1"].shape
    action_dim = params["w_mu"].shape[1]

    sub = 16 if jnp.dtype(compute_dtype) == jnp.dtype(jnp.bfloat16) else 8
    sp = _round_up(state_dim, sub)             # w1 sublane dim alignment
    hp = _round_up(hidden_dim, _LANE)          # padded hidden width
    np_ = _round_up(2 * action_dim, _LANE)     # padded fused-head width

    w1 = jnp.pad(params["w1"],
                 ((0, sp - state_dim), (0, hp - hidden_dim))).astype(compute_dtype)
    b1 = jnp.pad(params["b1"], ((0, 0), (0, hp - hidden_dim))).astype(jnp.float32)
    w2 = jnp.pad(params["w2"],
                 ((0, hp - hidden_dim), (0, hp - hidden_dim))).astype(compute_dtype)
    b2 = jnp.pad(params["b2"], ((0, 0), (0, hp - hidden_dim))).astype(jnp.float32)
    w_head = jnp.concatenate([params["w_mu"], params["w_ls"]], axis=1)
    w_head = jnp.pad(w_head,
                     ((0, hp - hidden_dim), (0, np_ - 2 * action_dim))).astype(compute_dtype)
    b_head = jnp.concatenate([params["b_mu"], params["b_ls"]], axis=1)
    b_head = jnp.pad(b_head, ((0, 0), (0, np_ - 2 * action_dim))).astype(jnp.float32)

    big = float(jnp.finfo(jnp.float32).max)
    col = jnp.arange(np_)
    is_log_std = (col >= action_dim) & (col < 2 * action_dim)
    lo = jnp.where(is_log_std, jnp.float32(min_log_std),
                   jnp.float32(-big))[None, :].astype(jnp.float32)
    hi = jnp.where(is_log_std, jnp.float32(max_log_std),
                   jnp.float32(big))[None, :].astype(jnp.float32)

    return PreparedActorParams(w1, b1, w2, b2, w_head, b_head, lo, hi,
                               int(state_dim), int(sp), int(hp),
                               int(action_dim), int(np_), int(sub))


def actor_forward_fused(s, prep: PreparedActorParams, *, block_batch=2048):
    """Runs Actor.forward in one batch-gridded Pallas kernel.

    Returns the fused lane-dense slab (batch_p, np_) f32 containing
    [mu | clamped log_std | zero pad] per row; consumers should index it
    directly (avoids re-reading the padded slab just to split columns).
    """
    batch, state_dim = s.shape
    assert state_dim == prep.state_dim, "state_dim mismatch vs prepared params"
    sub = prep.sublane

    # Balanced batch tiling. Aim for >=2 grid steps whenever there are enough
    # rows so both v7x TensorCores get work ("parallel" grid axis); on v5e/v6e
    # the large default block_batch keeps the (sequential) step count small.
    steps = max(1, pl.cdiv(batch, int(block_batch)))
    if steps == 1 and batch > sub:
        steps = 2
    tb = _round_up(pl.cdiv(batch, steps), sub)
    batch_p = tb * steps

    s_p = s
    if batch_p != batch or prep.sp != state_dim:
        s_p = jnp.pad(s, ((0, batch_p - batch), (0, prep.sp - state_dim)))
    s_p = s_p.astype(prep.w1.dtype)

    itemsize = jnp.dtype(prep.w1.dtype).itemsize
    w_elems = prep.sp * prep.hp + prep.hp * prep.hp + prep.hp * prep.np_
    flops = 2 * batch_p * w_elems
    bytes_accessed = (batch_p * prep.sp * itemsize          # s in
                      + batch_p * prep.np_ * 4              # fused out
                      + w_elems * itemsize                  # weights
                      + (2 * prep.hp + 3 * prep.np_) * 4)   # biases + clamp rows

    out = pl.pallas_call(
        actor_fwd_kernel,
        out_shape=jax.ShapeDtypeStruct((batch_p, prep.np_), jnp.float32),
        grid=(steps,),
        in_specs=[
            pl.BlockSpec((tb, prep.sp), lambda i: (i, 0)),        # s tile
            pl.BlockSpec((prep.sp, prep.hp), lambda i: (0, 0)),   # w1 (VMEM-resident)
            pl.BlockSpec((1, prep.hp), lambda i: (0, 0)),         # b1
            pl.BlockSpec((prep.hp, prep.hp), lambda i: (0, 0)),   # w2
            pl.BlockSpec((1, prep.hp), lambda i: (0, 0)),         # b2
            pl.BlockSpec((prep.hp, prep.np_), lambda i: (0, 0)),  # fused head W
            pl.BlockSpec((1, prep.np_), lambda i: (0, 0)),        # fused head b
            pl.BlockSpec((1, prep.np_), lambda i: (0, 0)),        # clamp lo row
            pl.BlockSpec((1, prep.np_), lambda i: (0, 0)),        # clamp hi row
        ],
        out_specs=pl.BlockSpec((tb, prep.np_), lambda i: (i, 0)),
        compiler_params=pltpu.CompilerParams(
            dimension_semantics=("parallel",),
            vmem_limit_bytes=32 * 1024 * 1024),
        cost_estimate=pl.CostEstimate(
            flops=flops, transcendentals=0, bytes_accessed=bytes_accessed),
    )(s_p, prep.w1, prep.b1, prep.w2, prep.b2, prep.w_head, prep.b_head,
      prep.lo, prep.hi)
    return out


def actor_forward(s, prep: PreparedActorParams, *, block_batch=2048):
    """Convenience wrapper returning (mu, log_std).

    NOTE: the column slices below re-read the padded slab; performance-critical
    consumers (e.g. the sampling path) should call `actor_forward_fused` and
    index the slab inside their own jit instead.
    """
    out = actor_forward_fused(s, prep, block_batch=block_batch)
    batch = s.shape[0]
    ad = prep.action_dim
    mu = out[:batch, :ad]
    log_std = out[:batch, ad:2 * ad]
    return mu, log_std


def init_actor_params(key, state_dim, action_dim, hidden_dim):
    """Deterministic init mimicking torch.nn.Linear default U(-1/sqrt(in), 1/sqrt(in))."""
    def linear(key, fan_in, fan_out):
        kw, kb = jax.random.split(key)
        bound = 1.0 / jnp.sqrt(jnp.float32(fan_in))
        w = jax.random.uniform(kw, (fan_in, fan_out), jnp.float32, -bound, bound)
        b = jax.random.uniform(kb, (1, fan_out), jnp.float32, -bound, bound)
        return w, b

    k1, k2, k3, k4 = jax.random.split(key, 4)
    w1, b1 = linear(k1, state_dim, hidden_dim)
    w2, b2 = linear(k2, hidden_dim, hidden_dim)
    w_mu, b_mu = linear(k3, hidden_dim, action_dim)
    w_ls, b_ls = linear(k4, hidden_dim, action_dim)
    return dict(w1=w1, b1=b1, w2=w2, b2=b2,
                w_mu=w_mu, b_mu=b_mu, w_ls=w_ls, b_ls=b_ls)


def reference_forward(s, p, min_log_std, max_log_std):
    h = jnp.clip(s @ p["w1"] + p["b1"], 0.0, 6.0)
    h = jnp.clip(h @ p["w2"] + p["b2"], 0.0, 6.0)
    mu = h @ p["w_mu"] + p["b_mu"]
    ls = jnp.clip(h @ p["w_ls"] + p["b_ls"], min_log_std, max_log_std)
    return mu, ls


# TODO(synk): Actor.sample / noisy_sample / ou_noisy_sample (Normal rsample,
# tanh squashing, log_prob, OU noise state) are not part of forward() and are
# left to the host-side JAX wrapper; only forward() is implemented as a kernel.

if __name__ == "__main__":
    batch, state_dim, action_dim, hidden_dim = 8, 16, 4, 32
    min_log_std, max_log_std = -20.0, 2.0

    key = jax.random.PRNGKey(0)
    k_params, k_input = jax.random.split(key)
    params = init_actor_params(k_params, state_dim, action_dim, hidden_dim)
    s = jax.random.normal(k_input, (batch, state_dim), jnp.float32)

    mu_ref, ls_ref = reference_forward(s, params, min_log_std, max_log_std)

    # f32 operand path (exact vs reference)
    prep_f32 = prepare_params(params, min_log_std=min_log_std,
                              max_log_std=max_log_std,
                              compute_dtype=jnp.float32)
    mu, log_std = actor_forward(s, prep_f32)
    jax.block_until_ready((mu, log_std))
    assert mu.shape == (batch, action_dim) and log_std.shape == (batch, action_dim)
    assert jnp.allclose(mu, mu_ref, atol=1e-5), "mu mismatch (f32)"
    assert jnp.allclose(log_std, ls_ref, atol=1e-5), "log_std mismatch (f32)"

    # default bf16 MXU-operand path (fast on v5e/v6e/v7x), f32 accumulate
    prep_bf16 = prepare_params(params, min_log_std=min_log_std,
                               max_log_std=max_log_std)
    mu_bf, ls_bf = actor_forward(s, prep_bf16)
    jax.block_until_ready((mu_bf, ls_bf))
    assert jnp.allclose(mu_bf, mu_ref, atol=5e-2, rtol=5e-2), "mu mismatch (bf16)"
    assert jnp.allclose(ls_bf, ls_ref, atol=5e-2, rtol=5e-2), "log_std mismatch (bf16)"

    print("KERNEL_OK")
</pallas_src>

<mosaic_0001>
module attributes {stable_mosaic.version = 11 : i64} {
  func.func @actor_fwd_kernel(%arg0: i32, %arg1: memref<8x16xf32, #tpu.memory_space<vmem>>, %arg2: memref<16x128xf32, #tpu.memory_space<vmem>>, %arg3: memref<1x128xf32, #tpu.memory_space<vmem>>, %arg4: memref<128x128xf32, #tpu.memory_space<vmem>>, %arg5: memref<1x128xf32, #tpu.memory_space<vmem>>, %arg6: memref<128x128xf32, #tpu.memory_space<vmem>>, %arg7: memref<1x128xf32, #tpu.memory_space<vmem>>, %arg8: memref<1x128xf32, #tpu.memory_space<vmem>>, %arg9: memref<1x128xf32, #tpu.memory_space<vmem>>, %arg10: memref<8x128xf32, #tpu.memory_space<vmem>>) attributes {dimension_semantics = [#tpu.dimension_semantics<parallel>], iteration_bounds = array<i64: 1>, scalar_prefetch = 0 : i64, scratch_operands = 0 : i64, tpu.core_type = #tpu.core_type<tc>, window_params = [{transform_indices = @transform_0, window_bounds = array<i64: 8, 16>}, {pipeline_mode = #tpu.pipeline_mode<synchronous>, transform_indices = @transform_1, window_bounds = array<i64: 16, 128>}, {pipeline_mode = #tpu.pipeline_mode<synchronous>, transform_indices = @transform_2, window_bounds = array<i64: 1, 128>}, {pipeline_mode = #tpu.pipeline_mode<synchronous>, transform_indices = @transform_3, window_bounds = array<i64: 128, 128>}, {pipeline_mode = #tpu.pipeline_mode<synchronous>, transform_indices = @transform_4, window_bounds = array<i64: 1, 128>}, {pipeline_mode = #tpu.pipeline_mode<synchronous>, transform_indices = @transform_5, window_bounds = array<i64: 128, 128>}, {pipeline_mode = #tpu.pipeline_mode<synchronous>, transform_indices = @transform_6, window_bounds = array<i64: 1, 128>}, {pipeline_mode = #tpu.pipeline_mode<synchronous>, transform_indices = @transform_7, window_bounds = array<i64: 1, 128>}, {pipeline_mode = #tpu.pipeline_mode<synchronous>, transform_indices = @transform_8, window_bounds = array<i64: 1, 128>}, {transform_indices = @transform_9, window_bounds = array<i64: 8, 128>}]} {
    %c0 = arith.constant 0 : index
    %c0_0 = arith.constant 0 : index
    %0 = vector.load %arg1[%c0, %c0_0] : memref<8x16xf32, #tpu.memory_space<vmem>>, vector<8x16xf32>
    %c0_1 = arith.constant 0 : index
    %c0_2 = arith.constant 0 : index
    %1 = vector.load %arg2[%c0_1, %c0_2] : memref<16x128xf32, #tpu.memory_space<vmem>>, vector<16x128xf32>
    %cst = arith.constant dense<0.000000e+00> : vector<8x128xf32>
    %2 = tpu.matmul %0, %1, %cst {dimension_numbers = #tpu.dot_dimension_numbers<[1], [0], [0], [1], [0, 0, 1, 1], [], []>} : vector<8x16xf32>, vector<16x128xf32>, vector<8x128xf32> -> vector<8x128xf32>
    %c0_3 = arith.constant 0 : index
    %c0_4 = arith.constant 0 : index
    %3 = vector.load %arg3[%c0_3, %c0_4] : memref<1x128xf32, #tpu.memory_space<vmem>>, vector<1x128xf32>
    %4 = vector.broadcast %3 : vector<1x128xf32> to vector<8x128xf32>
    %5 = arith.addf %2, %4 : vector<8x128xf32>
    %cst_5 = arith.constant 0.000000e+00 : f32
    %cst_6 = arith.constant 6.000000e+00 : f32
    %6 = vector.broadcast %cst_5 : f32 to vector<8x128xf32>
    %7 = arith.maximumf %6, %5 : vector<8x128xf32>
    %8 = vector.broadcast %cst_6 : f32 to vector<8x128xf32>
    %9 = arith.minimumf %8, %7 : vector<8x128xf32>
    %c0_7 = arith.constant 0 : index
    %c0_8 = arith.constant 0 : index
    %10 = vector.load %arg4[%c0_7, %c0_8] : memref<128x128xf32, #tpu.memory_space<vmem>>, vector<128x128xf32>
    %cst_9 = arith.constant dense<0.000000e+00> : vector<8x128xf32>
    %11 = tpu.matmul %9, %10, %cst_9 {dimension_numbers = #tpu.dot_dimension_numbers<[1], [0], [0], [1], [0, 0, 1, 1], [], []>} : vector<8x128xf32>, vector<128x128xf32>, vector<8x128xf32> -> vector<8x128xf32>
    %c0_10 = arith.constant 0 : index
    %c0_11 = arith.constant 0 : index
    %12 = vector.load %arg5[%c0_10, %c0_11] : memref<1x128xf32, #tpu.memory_space<vmem>>, vector<1x128xf32>
    %13 = vector.broadcast %12 : vector<1x128xf32> to vector<8x128xf32>
    %14 = arith.addf %11, %13 : vector<8x128xf32>
    %cst_12 = arith.constant 0.000000e+00 : f32
    %cst_13 = arith.constant 6.000000e+00 : f32
    %15 = vector.broadcast %cst_12 : f32 to vector<8x128xf32>
    %16 = arith.maximumf %15, %14 : vector<8x128xf32>
    %17 = vector.broadcast %cst_13 : f32 to vector<8x128xf32>
    %18 = arith.minimumf %17, %16 : vector<8x128xf32>
    %c0_14 = arith.constant 0 : index
    %c0_15 = arith.constant 0 : index
    %19 = vector.load %arg6[%c0_14, %c0_15] : memref<128x128xf32, #tpu.memory_space<vmem>>, vector<128x128xf32>
    %cst_16 = arith.constant dense<0.000000e+00> : vector<8x128xf32>
    %20 = tpu.matmul %18, %19, %cst_16 {dimension_numbers = #tpu.dot_dimension_numbers<[1], [0], [0], [1], [0, 0, 1, 1], [], []>} : vector<8x128xf32>, vector<128x128xf32>, vector<8x128xf32> -> vector<8x128xf32>
    %c0_17 = arith.constant 0 : index
    %c0_18 = arith.constant 0 : index
    %21 = vector.load %arg7[%c0_17, %c0_18] : memref<1x128xf32, #tpu.memory_space<vmem>>, vector<1x128xf32>
    %22 = vector.broadcast %21 : vector<1x128xf32> to vector<8x128xf32>
    %23 = arith.addf %20, %22 : vector<8x128xf32>
    %c0_19 = arith.constant 0 : index
    %c0_20 = arith.constant 0 : index
    %24 = vector.load %arg8[%c0_19, %c0_20] : memref<1x128xf32, #tpu.memory_space<vmem>>, vector<1x128xf32>
    %25 = vector.broadcast %24 : vector<1x128xf32> to vector<8x128xf32>
    %26 = arith.maximumf %23, %25 : vector<8x128xf32>
    %c0_21 = arith.constant 0 : index
    %c0_22 = arith.constant 0 : index
    %27 = vector.load %arg9[%c0_21, %c0_22] : memref<1x128xf32, #tpu.memory_space<vmem>>, vector<1x128xf32>
    %28 = vector.broadcast %27 : vector<1x128xf32> to vector<8x128xf32>
    %29 = arith.minimumf %26, %28 : vector<8x128xf32>
    %c0_23 = arith.constant 0 : index
    %c0_24 = arith.constant 0 : index
    %30 = vector.load %arg10[%c0_23, %c0_24] : memref<8x128xf32, #tpu.memory_space<vmem>>, vector<8x128xf32>
    tpu.vector_store %arg10[%c0_23, %c0_24], %29 {strides = array<i32>} : memref<8x128xf32, #tpu.memory_space<vmem>>, vector<8x128xf32>,
    return
  }
  func.func @transform_0(%arg0: i32) -> (i32, i32) {
    %c0_i32 = arith.constant 0 : i32
    %c0_i32_0 = arith.constant 0 : i32
    return %arg0, %c0_i32 : i32, i32
  }
  func.func @transform_1(%arg0: i32) -> (i32, i32) {
    %c0_i32 = arith.constant 0 : i32
    %c0_i32_0 = arith.constant 0 : i32
    %c0_i32_1 = arith.constant 0 : i32
    return %c0_i32, %c0_i32_0 : i32, i32
  }
  func.func @transform_2(%arg0: i32) -> (i32, i32) {
    %c0_i32 = arith.constant 0 : i32
    %c0_i32_0 = arith.constant 0 : i32
    %c0_i32_1 = arith.constant 0 : i32
    return %c0_i32, %c0_i32_0 : i32, i32
  }
  func.func @transform_3(%arg0: i32) -> (i32, i32) {
    %c0_i32 = arith.constant 0 : i32
    %c0_i32_0 = arith.constant 0 : i32
    %c0_i32_1 = arith.constant 0 : i32
    return %c0_i32, %c0_i32_0 : i32, i32
  }
  func.func @transform_4(%arg0: i32) -> (i32, i32) {
    %c0_i32 = arith.constant 0 : i32
    %c0_i32_0 = arith.constant 0 : i32
    %c0_i32_1 = arith.constant 0 : i32
    return %c0_i32, %c0_i32_0 : i32, i32
  }
  func.func @transform_5(%arg0: i32) -> (i32, i32) {
    %c0_i32 = arith.constant 0 : i32
    %c0_i32_0 = arith.constant 0 : i32
    %c0_i32_1 = arith.constant 0 : i32
    return %c0_i32, %c0_i32_0 : i32, i32
  }
  func.func @transform_6(%arg0: i32) -> (i32, i32) {
    %c0_i32 = arith.constant 0 : i32
    %c0_i32_0 = arith.constant 0 : i32
    %c0_i32_1 = arith.constant 0 : i32
    return %c0_i32, %c0_i32_0 : i32, i32
  }
  func.func @transform_7(%arg0: i32) -> (i32, i32) {
    %c0_i32 = arith.constant 0 : i32
    %c0_i32_0 = arith.constant 0 : i32
    %c0_i32_1 = arith.constant 0 : i32
    return %c0_i32, %c0_i32_0 : i32, i32
  }
  func.func @transform_8(%arg0: i32) -> (i32, i32) {
    %c0_i32 = arith.constant 0 : i32
    %c0_i32_0 = arith.constant 0 : i32
    %c0_i32_1 = arith.constant 0 : i32
    return %c0_i32, %c0_i32_0 : i32, i32
  }
  func.func @transform_9(%arg0: i32) -> (i32, i32) {
    %c0_i32 = arith.constant 0 : i32
    %c0_i32_0 = arith.constant 0 : i32
    return %arg0, %c0_i32 : i32, i32
  }
}

</mosaic_0001>

<llo_original>
// kernel: tpu_custom_call.1
$region0: #{tpu_custom_call.1}
  #allocation0 [shape = 'u32[]', space=smem, size = 0x4, offset = 0x4, fixed_abs, tag = 'smem constant byte address 0x4 - core index']
  #allocation1 [shape = 'u32[144,128]{1,0:T(1,128)}', space=vmem, size = 0x12000, scoped, tag = 'internal scratch']
  %s0 = inlined_call_operand.hbm [shape: f32[8,16], index: 0, kind: input, shape index: {}]
  %s1 = inlined_call_operand.hbm [shape: f32[16,128], index: 1, kind: input, shape index: {}]
  %s2 = inlined_call_operand.vmem [shape: f32[1,128], index: 2, kind: input, shape index: {}]
  %s3 = inlined_call_operand.hbm [shape: f32[128,128], index: 3, kind: input, shape index: {}]
  %s4 = inlined_call_operand.vmem [shape: f32[1,128], index: 4, kind: input, shape index: {}]
  %s5 = inlined_call_operand.hbm [shape: f32[128,128], index: 5, kind: input, shape index: {}]
  %s6 = inlined_call_operand.vmem [shape: f32[1,128], index: 6, kind: input, shape index: {}]
  %s7 = inlined_call_operand.vmem [shape: f32[1,128], index: 7, kind: input, shape index: {}]
  %s8 = inlined_call_operand.vmem [shape: f32[1,128], index: 8, kind: input, shape index: {}]
  %s9 = inlined_call_operand.hbm [shape: f32[8,128], index: 9, kind: output, shape index: {}]
  %s10 = sld [smem:[#allocation0]]
  $region62: #{tpu_custom_call.1} parent=0
    _
  %s12 = ssub.s32 1, %s10
  %s13 = scalar_select 0, %s12, %s10
  $region1: #{tpu_custom_call.1} parent=0
    #allocation2 [shape = 'u8[4096]{0}', space=vmem, size = 0x1000, scoped, tag = 'input window, operand 0, single buffered']
    #allocation3 [shape = 's32[1]{0}', space=sflag, size = 0x4, scoped, tag = 'scoped memory for tpu_custom_call.1']
    #allocation4 [shape = 's32[1]{0}', space=sflag, size = 0x4, scoped, tag = 'scoped memory for tpu_custom_call.1']
    #allocation5 [shape = 'u8[8192]{0}', space=vmem, size = 0x2000, scoped, tag = 'input window, operand 1, single buffered']
    #allocation6 [shape = 's32[1]{0}', space=sflag, size = 0x4, scoped, tag = 'scoped memory for tpu_custom_call.1']
    #allocation7 [shape = 'u8[65536]{0}', space=vmem, size = 0x10000, scoped, tag = 'input window, operand 3, single buffered']
    #allocation8 [shape = 'u8[65536]{0}', space=vmem, size = 0x10000, scoped, tag = 'input window, operand 5, single buffered']
    #allocation9 [shape = 's32[1]{0}', space=sflag, size = 0x4, scoped, tag = 'scoped memory for tpu_custom_call.1']
    #allocation10 [shape = 'u8[4096]{0}', space=vmem, size = 0x1000, scoped, tag = 'output window, operand 0, single buffered']
    %14 = vsyncpa [#allocation3], 0
    %15 = vsyncpa [#allocation6], 0
    %16 = vsyncpa [#allocation9], 0
    %17 = vsyncpa [#allocation4], 0
    // Predicated region
    $region2: #{tpu_custom_call.1} parent=1 // pred_check
      _
    $region3: #{tpu_custom_call.1} parent=1 // pred_check_branch
      %19 = sbr.rel (0) target = $region5
    $region4: #{tpu_custom_call.1} parent=1 // pred_region
      %s21 = ssub.s32 128, 128
      %22 = vsyncadd [#allocation3], %s21
      %s24 = sshll.u32 [#allocation2], 4
      %s25 = int_to_ptr.vmem [resolvable:$true] %s24
      %27 = dma.hbm_to_vmem [thread:$0]  %s0, 128, %s25, [#allocation3]
    $region5: #{tpu_custom_call.1} parent=1 // pred_fallthru
      _
    // Predicated region
    $region6: #{tpu_custom_call.1} parent=1 // pred_check
      _
    $region7: #{tpu_custom_call.1} parent=1 // pred_check_branch
      %29 = sbr.rel (0) target = $region9
    $region8: #{tpu_custom_call.1} parent=1 // pred_region
      %s31 = ssub.s32 256, 256
      %32 = vsyncadd [#allocation6], %s31
      %s33 = sshll.u32 [#allocation5], 4
      %s34 = int_to_ptr.vmem [resolvable:$true] %s33
      %39 = dma.hbm_to_vmem [thread:$0]  %s1, 256, %s34, [#allocation6], 128, 128, 8
    $region9: #{tpu_custom_call.1} parent=1 // pred_fallthru
      _
    // Predicated region
    $region10: #{tpu_custom_call.1} parent=1 // pred_check
      _
    $region11: #{tpu_custom_call.1} parent=1 // pred_check_branch
      %41 = sbr.rel (0) target = $region13
    $region12: #{tpu_custom_call.1} parent=1 // pred_region
      _
    $region13: #{tpu_custom_call.1} parent=1 // pred_fallthru
      _
    // Predicated region
    $region14: #{tpu_custom_call.1} parent=1 // pred_check
      _
    $region15: #{tpu_custom_call.1} parent=1 // pred_check_branch
      %43 = sbr.rel (0) target = $region17
    $region16: #{tpu_custom_call.1} parent=1 // pred_region
      %s45 = ssub.s32 2048, 2048
      %46 = vsyncadd [#allocation6], %s45
      %s47 = sshll.u32 [#allocation7], 4
      %s48 = int_to_ptr.vmem [resolvable:$true] %s47
      %53 = dma.hbm_to_vmem [thread:$0]  %s3, 2048, %s48, [#allocation6], 128, 128, 8
    $region17: #{tpu_custom_call.1} parent=1 // pred_fallthru
      _
    // Predicated region
    $region18: #{tpu_custom_call.1} parent=1 // pred_check
      _
    $region19: #{tpu_custom_call.1} parent=1 // pred_check_branch
      %55 = sbr.rel (0) target = $region21
    $region20: #{tpu_custom_call.1} parent=1 // pred_region
      _
    $region21: #{tpu_custom_call.1} parent=1 // pred_fallthru
      _
    // Predicated region
    $region22: #{tpu_custom_call.1} parent=1 // pred_check
      _
    $region23: #{tpu_custom_call.1} parent=1 // pred_check_branch
      %57 = sbr.rel (0) target = $region25
    $region24: #{tpu_custom_call.1} parent=1 // pred_region
      %s59 = ssub.s32 2048, 2048
      %60 = vsyncadd [#allocation9], %s59
      %s61 = sshll.u32 [#allocation8], 4
      %s62 = int_to_ptr.vmem [resolvable:$true] %s61
      %67 = dma.hbm_to_vmem [thread:$0]  %s5, 2048, %s62, [#allocation9], 128, 128, 8
    $region25: #{tpu_custom_call.1} parent=1 // pred_fallthru
      _
    // Predicated region
    $region26: #{tpu_custom_call.1} parent=1 // pred_check
      _
    $region27: #{tpu_custom_call.1} parent=1 // pred_check_branch
      %69 = sbr.rel (0) target = $region29
    $region28: #{tpu_custom_call.1} parent=1 // pred_region
      _
    $region29: #{tpu_custom_call.1} parent=1 // pred_fallthru
      _
    // Predicated region
    $region30: #{tpu_custom_call.1} parent=1 // pred_check
      _
    $region31: #{tpu_custom_call.1} parent=1 // pred_check_branch
      %71 = sbr.rel (0) target = $region33
    $region32: #{tpu_custom_call.1} parent=1 // pred_region
      _
    $region33: #{tpu_custom_call.1} parent=1 // pred_fallthru
      _
    // Predicated region
    $region34: #{tpu_custom_call.1} parent=1 // pred_check
      _
    $region35: #{tpu_custom_call.1} parent=1 // pred_check_branch
      %73 = sbr.rel (0) target = $region37
    $region36: #{tpu_custom_call.1} parent=1 // pred_region
      _
    $region37: #{tpu_custom_call.1} parent=1 // pred_fallthru
      _
    // Predicated region
    $region38: #{tpu_custom_call.1} parent=1 // pred_check
      _
    $region39: #{tpu_custom_call.1} parent=1 // pred_check_branch
      %75 = sbr.rel (0) target = $region41
    $region40: #{tpu_custom_call.1} parent=1 // pred_region
      %76 = dma.done [#allocation3], 128
    $region41: #{tpu_custom_call.1} parent=1 // pred_fallthru
      _
    // Predicated region
    $region42: #{tpu_custom_call.1} parent=1 // pred_check
      _
    $region43: #{tpu_custom_call.1} parent=1 // pred_check_branch
      %78 = sbr.rel (0) target = $region45
    $region44: #{tpu_custom_call.1} parent=1 // pred_region
      %79 = dma.done [#allocation6], 256
    $region45: #{tpu_custom_call.1} parent=1 // pred_fallthru
      _
    // Predicated region
    $region46: #{tpu_custom_call.1} parent=1 // pred_check
      _
    $region47: #{tpu_custom_call.1} parent=1 // pred_check_branch
      %81 = sbr.rel (0) target = $region49
    $region48: #{tpu_custom_call.1} parent=1 // pred_region
      %82 = dma.done [#allocation6], 2048
    $region49: #{tpu_custom_call.1} parent=1 // pred_fallthru
      _
    // Predicated region
    $region50: #{tpu_custom_call.1} parent=1 // pred_check
      _
    $region51: #{tpu_custom_call.1} parent=1 // pred_check_branch
      %84 = sbr.rel (0) target = $region53
    $region52: #{tpu_custom_call.1} parent=1 // pred_region
      %85 = dma.done [#allocation9], 2048
    $region53: #{tpu_custom_call.1} parent=1 // pred_fallthru
      _
    %v86 = vld [vmem:[#allocation2] sm:$0xff]
    %v87 = vld [vmem:[#allocation5] sm:$0xff]
    %v88 = vld [vmem:[#allocation5 + $0x8] sm:$0xff]
    %v89 = vld [vmem:[%s2] sm:$0x1]
    %v91 = vlaneseq
    %v92 = vshrl.u32 %v91, 7
    %v93 = vsub.s32 0, %v92
    %v94 = vrot.slane %v89, %v93
    %vm96 = vcmask 130048
    %v98 = vsel %vm96, %v86, 0
    %100 = vmatprep.subr.mxu0 0.0
    %101 = vmatpush1.msra.mxu0 %v87
    %102 = vmatprep.subr.mxu0 0.0
    %103 = vmatpush1.msra.mxu0 %v88
    %104 = vmatprep.subr.mxu0 0.0
    %105 = vmatpush1.msra.mxu0 0.0
    %106 = vmatprep.subr.mxu0 0.0
    %107 = vmatpush1.msra.mxu0 0.0
    %108 = vmatprep.subr.mxu0 0.0
    %109 = vmatpush1.msra.mxu0 0.0
    %110 = vmatprep.subr.mxu0 0.0
    %111 = vmatpush1.msra.mxu0 0.0
    %112 = vmatprep.subr.mxu0 0.0
    %113 = vmatpush1.msra.mxu0 0.0
    %114 = vmatprep.subr.mxu0 0.0
    %115 = vmatpush1.msra.mxu0 0.0
    %116 = vmatprep.subr.mxu0 0.0
    %117 = vmatpush1.msra.mxu0 0.0
    %118 = vmatprep.subr.mxu0 0.0
    %119 = vmatpush1.msra.mxu0 0.0
    %120 = vmatprep.subr.mxu0 0.0
    %121 = vmatpush1.msra.mxu0 0.0
    %122 = vmatprep.subr.mxu0 0.0
    %123 = vmatpush1.msra.mxu0 0.0
    %124 = vmatprep.subr.mxu0 0.0
    %125 = vmatpush1.msra.mxu0 0.0
    %126 = vmatprep.subr.mxu0 0.0
    %127 = vmatpush1.msra.mxu0 0.0
    %128 = vmatprep.subr.mxu0 0.0
    %129 = vmatpush1.msra.mxu0 0.0
    %130 = vmatprep.subr.mxu0 0.0
    %131 = vmatpush1.msra.mxu0 0.0
    %132 = vmatprep.subr.mxu0 0.0
    %133 = vmatpush1.msra.mxu0 0.0
    %134 = vmatprep.subr.mxu0 0.0
    %135 = vmatpush1.msra.mxu0 0.0
    %136 = vmatprep.subr.mxu0 0.0
    %137 = vmatpush1.msra.mxu0 0.0
    %138 = vmatprep.subr.mxu0 0.0
    %139 = vmatpush1.msra.mxu0 0.0
    %140 = vmatprep.subr.mxu0 0.0
    %141 = vmatpush1.msra.mxu0 0.0
    %142 = vmatprep.subr.mxu0 0.0
    %143 = vmatpush1.msra.mxu0 0.0
    %144 = vmatprep.subr.mxu0 0.0
    %145 = vmatpush1.msra.mxu0 0.0
    %146 = vmatprep.subr.mxu0 0.0
    %147 = vmatpush1.msra.mxu0 0.0
    %148 = vmatprep.subr.mxu0 0.0
    %149 = vmatpush1.msra.mxu0 0.0
    %150 = vmatprep.subr.mxu0 0.0
    %151 = vmatpush1.msra.mxu0 0.0
    %152 = vmatprep.subr.mxu0 0.0
    %153 = vmatpush1.msra.mxu0 0.0
    %154 = vmatprep.subr.mxu0 0.0
    %155 = vmatpush1.msra.mxu0 0.0
    %156 = vmatprep.subr.mxu0 0.0
    %157 = vmatpush1.msra.mxu0 0.0
    %158 = vmatprep.subr.mxu0 0.0
    %159 = vmatpush1.msra.mxu0 0.0
    %160 = vmatprep.subr.mxu0 0.0
    %161 = vmatpush1.msra.mxu0 0.0
    %162 = vmatprep.subr.mxu0 0.0
    %163 = vmatpush1.msra.mxu0 0.0
    %164 = vmatprep.mubr.f32.mxu0 0.0
    %165 = vmatmul.mubr.f32.gmra.mrb[0].mxu0 %v98
    %v166 = vpop.f32.mrb[0].mxu0
    %v167 = vadd.f32 %v94, %v166
    %v168 = vpop.f32.mrb[0].mxu0
    %169 = vdwg.mxu0
    %v170 = vmax.f32 %v167, 0.0
    %v171 = vmin.f32 %v170, 6.0
    %v172 = vld [vmem:[#allocation7] sm:$0xff]
    %v173 = vld [vmem:[#allocation7 + $0x8] sm:$0xff]
    %v174 = vld [vmem:[#allocation7 + $0x10] sm:$0xff]
    %v175 = vld [vmem:[#allocation7 + $0x18] sm:$0xff]
    %v176 = vld [vmem:[#allocation7 + $0x20] sm:$0xff]
    %v177 = vld [vmem:[#allocation7 + $0x28] sm:$0xff]
    %v178 = vld [vmem:[#allocation7 + $0x30] sm:$0xff]
    %v179 = vld [vmem:[#allocation7 + $0x38] sm:$0xff]
    %v180 = vld [vmem:[#allocation7 + $0x40] sm:$0xff]
    %v181 = vld [vmem:[#allocation7 + $0x48] sm:$0xff]
    %v182 = vld [vmem:[#allocation7 + $0x50] sm:$0xff]
    %v183 = vld [vmem:[#allocation7 + $0x58] sm:$0xff]
    %v184 = vld [vmem:[#allocation7 + $0x60] sm:$0xff]
    %v185 = vld [vmem:[#allocation7 + $0x68] sm:$0xff]
    %v186 = vld [vmem:[#allocation7 + $0x70] sm:$0xff]
    %v187 = vld [vmem:[#allocation7 + $0x78] sm:$0xff]
    %v188 = vld [vmem:[%s4] sm:$0x1]
    %v190 = vlaneseq
    %v191 = vshrl.u32 %v190, 7
    %v192 = vsub.s32 0, %v191
    %v193 = vrot.slane %v188, %v192
    %195 = vmatprep.subr.mxu0 0.0
    %196 = vmatpush1.msra.mxu0 %v172
    %197 = vmatprep.subr.mxu0 0.0
    %198 = vmatpush1.msra.mxu0 %v173
    %199 = vmatprep.subr.mxu0 0.0
    %200 = vmatpush1.msra.mxu0 %v174
    %201 = vmatprep.subr.mxu0 0.0
    %202 = vmatpush1.msra.mxu0 %v175
    %203 = vmatprep.subr.mxu0 0.0
    %204 = vmatpush1.msra.mxu0 %v176
    %205 = vmatprep.subr.mxu0 0.0
    %206 = vmatpush1.msra.mxu0 %v177
    %207 = vmatprep.subr.mxu0 0.0
    %208 = vmatpush1.msra.mxu0 %v178
    %209 = vmatprep.subr.mxu0 0.0
    %210 = vmatpush1.msra.mxu0 %v179
    %211 = vmatprep.subr.mxu0 0.0
    %212 = vmatpush1.msra.mxu0 %v180
    %213 = vmatprep.subr.mxu0 0.0
    %214 = vmatpush1.msra.mxu0 %v181
    %215 = vmatprep.subr.mxu0 0.0
    %216 = vmatpush1.msra.mxu0 %v182
    %217 = vmatprep.subr.mxu0 0.0
    %218 = vmatpush1.msra.mxu0 %v183
    %219 = vmatprep.subr.mxu0 0.0
    %220 = vmatpush1.msra.mxu0 %v184
    %221 = vmatprep.subr.mxu0 0.0
    %222 = vmatpush1.msra.mxu0 %v185
    %223 = vmatprep.subr.mxu0 0.0
    %224 = vmatpush1.msra.mxu0 %v186
    %225 = vmatprep.subr.mxu0 0.0
    %226 = vmatpush1.msra.mxu0 %v187
    %227 = vmatprep.subr.mxu0 0.0
    %228 = vmatpush1.msra.mxu0 0.0
    %229 = vmatprep.subr.mxu0 0.0
    %230 = vmatpush1.msra.mxu0 0.0
    %231 = vmatprep.subr.mxu0 0.0
    %232 = vmatpush1.msra.mxu0 0.0
    %233 = vmatprep.subr.mxu0 0.0
    %234 = vmatpush1.msra.mxu0 0.0
    %235 = vmatprep.subr.mxu0 0.0
    %236 = vmatpush1.msra.mxu0 0.0
    %237 = vmatprep.subr.mxu0 0.0
    %238 = vmatpush1.msra.mxu0 0.0
    %239 = vmatprep.subr.mxu0 0.0
    %240 = vmatpush1.msra.mxu0 0.0
    %241 = vmatprep.subr.mxu0 0.0
    %242 = vmatpush1.msra.mxu0 0.0
    %243 = vmatprep.subr.mxu0 0.0
    %244 = vmatpush1.msra.mxu0 0.0
    %245 = vmatprep.subr.mxu0 0.0
    %246 = vmatpush1.msra.mxu0 0.0
    %247 = vmatprep.subr.mxu0 0.0
    %248 = vmatpush1.msra.mxu0 0.0
    %249 = vmatprep.subr.mxu0 0.0
    %250 = vmatpush1.msra.mxu0 0.0
    %251 = vmatprep.subr.mxu0 0.0
    %252 = vmatpush1.msra.mxu0 0.0
    %253 = vmatprep.subr.mxu0 0.0
    %254 = vmatpush1.msra.mxu0 0.0
    %255 = vmatprep.subr.mxu0 0.0
    %256 = vmatpush1.msra.mxu0 0.0
    %257 = vmatprep.subr.mxu0 0.0
    %258 = vmatpush1.msra.mxu0 0.0
    %259 = vmatprep.mubr.f32.mxu0 0.0
    %260 = vmatmul.mubr.f32.gmra.mrb[0].mxu0 %v171
    %v261 = vpop.f32.mrb[0].mxu0
    %v262 = vadd.f32 %v193, %v261
    %v263 = vpop.f32.mrb[0].mxu0
    %264 = vdwg.mxu0
    %v265 = vmax.f32 %v262, 0.0
    %v266 = vmin.f32 %v265, 6.0
    %v267 = vld [vmem:[#allocation8] sm:$0xff]
    %v268 = vld [vmem:[#allocation8 + $0x8] sm:$0xff]
    %v269 = vld [vmem:[#allocation8 + $0x10] sm:$0xff]
    %v270 = vld [vmem:[#allocation8 + $0x18] sm:$0xff]
    %v271 = vld [vmem:[#allocation8 + $0x20] sm:$0xff]
    %v272 = vld [vmem:[#allocation8 + $0x28] sm:$0xff]
    %v273 = vld [vmem:[#allocation8 + $0x30] sm:$0xff]
    %v274 = vld [vmem:[#allocation8 + $0x38] sm:$0xff]
    %v275 = vld [vmem:[#allocation8 + $0x40] sm:$0xff]
    %v276 = vld [vmem:[#allocation8 + $0x48] sm:$0xff]
    %v277 = vld [vmem:[#allocation8 + $0x50] sm:$0xff]
    %v278 = vld [vmem:[#allocation8 + $0x58] sm:$0xff]
    %v279 = vld [vmem:[#allocation8 + $0x60] sm:$0xff]
    %v280 = vld [vmem:[#allocation8 + $0x68] sm:$0xff]
    %v281 = vld [vmem:[#allocation8 + $0x70] sm:$0xff]
    %v282 = vld [vmem:[#allocation8 + $0x78] sm:$0xff]
    %v283 = vld [vmem:[%s6] sm:$0x1]
    %v285 = vlaneseq
    %v286 = vshrl.u32 %v285, 7
    %v287 = vsub.s32 0, %v286
    %v288 = vrot.slane %v283, %v287
    %290 = vmatprep.subr.mxu0 0.0
    %291 = vmatpush1.msra.mxu0 %v267
    %292 = vmatprep.subr.mxu0 0.0
    %293 = vmatpush1.msra.mxu0 %v268
    %294 = vmatprep.subr.mxu0 0.0
    %295 = vmatpush1.msra.mxu0 %v269
    %296 = vmatprep.subr.mxu0 0.0
    %297 = vmatpush1.msra.mxu0 %v270
    %298 = vmatprep.subr.mxu0 0.0
    %299 = vmatpush1.msra.mxu0 %v271
    %300 = vmatprep.subr.mxu0 0.0
    %301 = vmatpush1.msra.mxu0 %v272
    %302 = vmatprep.subr.mxu0 0.0
    %303 = vmatpush1.msra.mxu0 %v273
    %304 = vmatprep.subr.mxu0 0.0
    %305 = vmatpush1.msra.mxu0 %v274
    %306 = vmatprep.subr.mxu0 0.0
    %307 = vmatpush1.msra.mxu0 %v275
    %308 = vmatprep.subr.mxu0 0.0
    %309 = vmatpush1.msra.mxu0 %v276
    %310 = vmatprep.subr.mxu0 0.0
    %311 = vmatpush1.msra.mxu0 %v277
    %312 = vmatprep.subr.mxu0 0.0
    %313 = vmatpush1.msra.mxu0 %v278
    %314 = vmatprep.subr.mxu0 0.0
    %315 = vmatpush1.msra.mxu0 %v279
    %316 = vmatprep.subr.mxu0 0.0
    %317 = vmatpush1.msra.mxu0 %v280
    %318 = vmatprep.subr.mxu0 0.0
    %319 = vmatpush1.msra.mxu0 %v281
    %320 = vmatprep.subr.mxu0 0.0
    %321 = vmatpush1.msra.mxu0 %v282
    %322 = vmatprep.subr.mxu0 0.0
    %323 = vmatpush1.msra.mxu0 0.0
    %324 = vmatprep.subr.mxu0 0.0
    %325 = vmatpush1.msra.mxu0 0.0
    %326 = vmatprep.subr.mxu0 0.0
    %327 = vmatpush1.msra.mxu0 0.0
    %328 = vmatprep.subr.mxu0 0.0
    %329 = vmatpush1.msra.mxu0 0.0
    %330 = vmatprep.subr.mxu0 0.0
    %331 = vmatpush1.msra.mxu0 0.0
    %332 = vmatprep.subr.mxu0 0.0
    %333 = vmatpush1.msra.mxu0 0.0
    %334 = vmatprep.subr.mxu0 0.0
    %335 = vmatpush1.msra.mxu0 0.0
    %336 = vmatprep.subr.mxu0 0.0
    %337 = vmatpush1.msra.mxu0 0.0
    %338 = vmatprep.subr.mxu0 0.0
    %339 = vmatpush1.msra.mxu0 0.0
    %340 = vmatprep.subr.mxu0 0.0
    %341 = vmatpush1.msra.mxu0 0.0
    %342 = vmatprep.subr.mxu0 0.0
    %343 = vmatpush1.msra.mxu0 0.0
    %344 = vmatprep.subr.mxu0 0.0
    %345 = vmatpush1.msra.mxu0 0.0
    %346 = vmatprep.subr.mxu0 0.0
    %347 = vmatpush1.msra.mxu0 0.0
    %348 = vmatprep.subr.mxu0 0.0
    %349 = vmatpush1.msra.mxu0 0.0
    %350 = vmatprep.subr.mxu0 0.0
    %351 = vmatpush1.msra.mxu0 0.0
    %352 = vmatprep.subr.mxu0 0.0
    %353 = vmatpush1.msra.mxu0 0.0
    %354 = vmatprep.mubr.f32.mxu0 0.0
    %355 = vmatmul.mubr.f32.gmra.mrb[0].mxu0 %v266
    %v356 = vpop.f32.mrb[0].mxu0
    %v357 = vadd.f32 %v288, %v356
    %v358 = vpop.f32.mrb[0].mxu0
    %359 = vdwg.mxu0
    %v360 = vld [vmem:[%s7] sm:$0x1]
    %v362 = vlaneseq
    %v363 = vshrl.u32 %v362, 7
    %v364 = vsub.s32 0, %v363
    %v365 = vrot.slane %v360, %v364
    %v367 = vmax.f32 %v357, %v365
    %v368 = vld [vmem:[%s8] sm:$0x1]
    %v370 = vlaneseq
    %v371 = vshrl.u32 %v370, 7
    %v372 = vsub.s32 0, %v371
    %v373 = vrot.slane %v368, %v372
    %v375 = vmin.f32 %v367, %v373
    %376 = vst [vmem:[#allocation10] sm:$0xff] %v375
    // Predicated region
    $region54: #{tpu_custom_call.1} parent=1 // pred_check
      _
    $region55: #{tpu_custom_call.1} parent=1 // pred_check_branch
      %378 = sbr.rel (0) target = $region57
    $region56: #{tpu_custom_call.1} parent=1 // pred_region
      %s380 = ssub.s32 128, 128
      %381 = vsyncadd [#allocation4], %s380
      %s383 = sshll.u32 [#allocation10], 4
      %s384 = int_to_ptr.vmem [resolvable:$true] %s383
      %386 = dma.vmem_to_hbm [thread:$0]  %s384, 128, %s9, [#allocation4]
    $region57: #{tpu_custom_call.1} parent=1 // pred_fallthru
      _
    // Predicated region
    $region58: #{tpu_custom_call.1} parent=1 // pred_check
      _
    $region59: #{tpu_custom_call.1} parent=1 // pred_check_branch
      %388 = sbr.rel (0) target = $region61
    $region60: #{tpu_custom_call.1} parent=1 // pred_region
      %389 = dma.done [#allocation4], 128
    $region61: #{tpu_custom_call.1} parent=1 // pred_fallthru
      _
    %390 = vsyncpa [#allocation3], 1
    %391 = vsyncpa [#allocation6], 1
    %392 = vsyncpa [#allocation9], 1
    %393 = vsyncpa [#allocation4], 1

</llo_original>
